<compile_context>
chip_gen: v6e
topology: v6e:2x2x1
jax: 0.10.0
libtpu: 0.0.40
codegen_flags: <defaults>
</compile_context>

<pallas_src>
import jax
import jax.numpy as jnp
from jax.experimental import pallas as pl
from jax.experimental.pallas import tpu as pltpu

SUBLANE = 8


def dqn_kernel(x_ref, w1_ref, b1_ref, w2_ref, b2_ref,
               w3_ref, b3_ref, w4_ref, b4_ref, o_ref):
    # Fused 4-layer MLP on one batch tile; everything fits in VMEM.
    h = jnp.dot(x_ref[...], w1_ref[...], preferred_element_type=jnp.float32) + b1_ref[...]
    h = jnp.maximum(h, 0.0)
    h = jnp.dot(h, w2_ref[...], preferred_element_type=jnp.float32) + b2_ref[...]
    h = jnp.maximum(h, 0.0)
    h = jnp.dot(h, w3_ref[...], preferred_element_type=jnp.float32) + b3_ref[...]
    h = jnp.maximum(h, 0.0)
    h = jnp.dot(h, w4_ref[...], preferred_element_type=jnp.float32) + b4_ref[...]
    o_ref[...] = h.astype(o_ref.dtype)


def dqn_forward(x, params, *, block_b=1024):
    """x: [B, state_dim] float32. params: w1..w4 ([in,out]) and b1..b4 ([1,out])."""
    B, state_dim = x.shape
    h1 = params["w1"].shape[1]
    h2 = params["w2"].shape[1]
    h3 = params["w3"].shape[1]
    action_dim = params["w4"].shape[1]

    # --- batch tiling: TB is a multiple of 8 sublanes, capped at block_b ---
    b_rounded = max(SUBLANE, pl.cdiv(B, SUBLANE) * SUBLANE)
    tb = min(block_b, b_rounded)
    num_tiles = pl.cdiv(b_rounded, tb)
    Bp = num_tiles * tb
    xp = jnp.pad(x, ((0, Bp - B), (0, 0))) if Bp != B else x

    # x / output tiles move with the grid; weights & biases are resident
    # (constant index_map => fetched once, reused across all grid steps).
    x_spec = pl.BlockSpec((tb, state_dim), lambda i: (i, 0))
    out_spec = pl.BlockSpec((tb, action_dim), lambda i: (i, 0))

    def resident(shape):
        return pl.BlockSpec(shape, lambda i: (0, 0))

    out = pl.pallas_call(
        dqn_kernel,
        out_shape=jax.ShapeDtypeStruct((Bp, action_dim), jnp.float32),
        grid=(num_tiles,),
        in_specs=[
            x_spec,
            resident((state_dim, h1)), resident((1, h1)),
            resident((h1, h2)),        resident((1, h2)),
            resident((h2, h3)),        resident((1, h3)),
            resident((h3, action_dim)), resident((1, action_dim)),
        ],
        out_specs=out_spec,
        compiler_params=pltpu.CompilerParams(
            dimension_semantics=("parallel",),  # shard batch tiles across v7x's 2 TCs
        ),
    )(xp,
      params["w1"], params["b1"],
      params["w2"], params["b2"],
      params["w3"], params["b3"],
      params["w4"], params["b4"])

    return out[:B] if Bp != B else out


def init_dqn_params(key, state_dim, action_dim):
    """PyTorch nn.Linear default init: U(-1/sqrt(fan_in), 1/sqrt(fan_in)); W stored [in,out]."""
    dims = [(state_dim, 32), (32, 32), (32, 16), (16, action_dim)]
    params = {}
    keys = jax.random.split(key, 2 * len(dims))
    for i, (fan_in, fan_out) in enumerate(dims):
        bound = 1.0 / jnp.sqrt(jnp.float32(fan_in))
        w = jax.random.uniform(keys[2 * i], (fan_in, fan_out),
                               minval=-bound, maxval=bound, dtype=jnp.float32)
        b = jax.random.uniform(keys[2 * i + 1], (1, fan_out),
                               minval=-bound, maxval=bound, dtype=jnp.float32)
        params[f"w{i + 1}"] = w
        params[f"b{i + 1}"] = b
    return params


def _reference(x, params):
    h = jnp.maximum(x @ params["w1"] + params["b1"], 0.0)
    h = jnp.maximum(h @ params["w2"] + params["b2"], 0.0)
    h = jnp.maximum(h @ params["w3"] + params["b3"], 0.0)
    return h @ params["w4"] + params["b4"]


if __name__ == "__main__":
    key = jax.random.PRNGKey(0)
    k_x, k_p, k_x2 = jax.random.split(key, 3)

    batch = 2
    state_dim = 8
    action_dim = 4

    params = init_dqn_params(k_p, state_dim, action_dim)

    # Small-batch check (single partial tile, padded to 8 sublanes).
    x = jax.random.normal(k_x, (batch, state_dim), dtype=jnp.float32)
    out = dqn_forward(x, params)
    jax.block_until_ready(out)
    ref = _reference(x, params)
    assert out.shape == (batch, action_dim)
    assert jnp.allclose(out, ref, atol=1e-5, rtol=1e-5)

    # Multi-tile check to exercise the batch grid + partial last tile.
    x2 = jax.random.normal(k_x2, (300, state_dim), dtype=jnp.float32)
    out2 = dqn_forward(x2, params, block_b=128)
    jax.block_until_ready(out2)
    ref2 = _reference(x2, params)
    assert out2.shape == (300, action_dim)
    assert jnp.allclose(out2, ref2, atol=1e-5, rtol=1e-5)

    print("KERNEL_OK")
</pallas_src>

<mosaic_0001>
module attributes {stable_mosaic.version = 11 : i64} {
  func.func @dqn_kernel(%arg0: i32, %arg1: memref<8x8xf32, #tpu.memory_space<vmem>>, %arg2: memref<8x32xf32, #tpu.memory_space<vmem>>, %arg3: memref<1x32xf32, #tpu.memory_space<vmem>>, %arg4: memref<32x32xf32, #tpu.memory_space<vmem>>, %arg5: memref<1x32xf32, #tpu.memory_space<vmem>>, %arg6: memref<32x16xf32, #tpu.memory_space<vmem>>, %arg7: memref<1x16xf32, #tpu.memory_space<vmem>>, %arg8: memref<16x4xf32, #tpu.memory_space<vmem>>, %arg9: memref<1x4xf32, #tpu.memory_space<vmem>>, %arg10: memref<8x4xf32, #tpu.memory_space<vmem>>) attributes {dimension_semantics = [#tpu.dimension_semantics<parallel>], iteration_bounds = array<i64: 1>, scalar_prefetch = 0 : i64, scratch_operands = 0 : i64, tpu.core_type = #tpu.core_type<tc>, window_params = [{transform_indices = @transform_0, window_bounds = array<i64: 8, 8>}, {pipeline_mode = #tpu.pipeline_mode<synchronous>, transform_indices = @transform_1, window_bounds = array<i64: 8, 32>}, {pipeline_mode = #tpu.pipeline_mode<synchronous>, transform_indices = @transform_2, window_bounds = array<i64: 1, 32>}, {pipeline_mode = #tpu.pipeline_mode<synchronous>, transform_indices = @transform_3, window_bounds = array<i64: 32, 32>}, {pipeline_mode = #tpu.pipeline_mode<synchronous>, transform_indices = @transform_4, window_bounds = array<i64: 1, 32>}, {pipeline_mode = #tpu.pipeline_mode<synchronous>, transform_indices = @transform_5, window_bounds = array<i64: 32, 16>}, {pipeline_mode = #tpu.pipeline_mode<synchronous>, transform_indices = @transform_6, window_bounds = array<i64: 1, 16>}, {pipeline_mode = #tpu.pipeline_mode<synchronous>, transform_indices = @transform_7, window_bounds = array<i64: 16, 4>}, {pipeline_mode = #tpu.pipeline_mode<synchronous>, transform_indices = @transform_8, window_bounds = array<i64: 1, 4>}, {transform_indices = @transform_9, window_bounds = array<i64: 8, 4>}]} {
    %c0 = arith.constant 0 : index
    %c0_0 = arith.constant 0 : index
    %0 = vector.load %arg1[%c0, %c0_0] : memref<8x8xf32, #tpu.memory_space<vmem>>, vector<8x8xf32>
    %c0_1 = arith.constant 0 : index
    %c0_2 = arith.constant 0 : index
    %1 = vector.load %arg2[%c0_1, %c0_2] : memref<8x32xf32, #tpu.memory_space<vmem>>, vector<8x32xf32>
    %cst = arith.constant dense<0.000000e+00> : vector<8x32xf32>
    %2 = tpu.matmul %0, %1, %cst {dimension_numbers = #tpu.dot_dimension_numbers<[1], [0], [0], [1], [0, 0, 1, 1], [], []>} : vector<8x8xf32>, vector<8x32xf32>, vector<8x32xf32> -> vector<8x32xf32>
    %c0_3 = arith.constant 0 : index
    %c0_4 = arith.constant 0 : index
    %3 = vector.load %arg3[%c0_3, %c0_4] : memref<1x32xf32, #tpu.memory_space<vmem>>, vector<1x32xf32>
    %4 = vector.broadcast %3 : vector<1x32xf32> to vector<8x32xf32>
    %5 = arith.addf %2, %4 : vector<8x32xf32>
    %cst_5 = arith.constant 0.000000e+00 : f32
    %6 = vector.broadcast %cst_5 : f32 to vector<8x32xf32>
    %7 = arith.maximumf %5, %6 : vector<8x32xf32>
    %c0_6 = arith.constant 0 : index
    %c0_7 = arith.constant 0 : index
    %8 = vector.load %arg4[%c0_6, %c0_7] : memref<32x32xf32, #tpu.memory_space<vmem>>, vector<32x32xf32>
    %cst_8 = arith.constant dense<0.000000e+00> : vector<8x32xf32>
    %9 = tpu.matmul %7, %8, %cst_8 {dimension_numbers = #tpu.dot_dimension_numbers<[1], [0], [0], [1], [0, 0, 1, 1], [], []>} : vector<8x32xf32>, vector<32x32xf32>, vector<8x32xf32> -> vector<8x32xf32>
    %c0_9 = arith.constant 0 : index
    %c0_10 = arith.constant 0 : index
    %10 = vector.load %arg5[%c0_9, %c0_10] : memref<1x32xf32, #tpu.memory_space<vmem>>, vector<1x32xf32>
    %11 = vector.broadcast %10 : vector<1x32xf32> to vector<8x32xf32>
    %12 = arith.addf %9, %11 : vector<8x32xf32>
    %cst_11 = arith.constant 0.000000e+00 : f32
    %13 = vector.broadcast %cst_11 : f32 to vector<8x32xf32>
    %14 = arith.maximumf %12, %13 : vector<8x32xf32>
    %c0_12 = arith.constant 0 : index
    %c0_13 = arith.constant 0 : index
    %15 = vector.load %arg6[%c0_12, %c0_13] : memref<32x16xf32, #tpu.memory_space<vmem>>, vector<32x16xf32>
    %cst_14 = arith.constant dense<0.000000e+00> : vector<8x16xf32>
    %16 = tpu.matmul %14, %15, %cst_14 {dimension_numbers = #tpu.dot_dimension_numbers<[1], [0], [0], [1], [0, 0, 1, 1], [], []>} : vector<8x32xf32>, vector<32x16xf32>, vector<8x16xf32> -> vector<8x16xf32>
    %c0_15 = arith.constant 0 : index
    %c0_16 = arith.constant 0 : index
    %17 = vector.load %arg7[%c0_15, %c0_16] : memref<1x16xf32, #tpu.memory_space<vmem>>, vector<1x16xf32>
    %18 = vector.broadcast %17 : vector<1x16xf32> to vector<8x16xf32>
    %19 = arith.addf %16, %18 : vector<8x16xf32>
    %cst_17 = arith.constant 0.000000e+00 : f32
    %20 = vector.broadcast %cst_17 : f32 to vector<8x16xf32>
    %21 = arith.maximumf %19, %20 : vector<8x16xf32>
    %c0_18 = arith.constant 0 : index
    %c0_19 = arith.constant 0 : index
    %22 = vector.load %arg8[%c0_18, %c0_19] : memref<16x4xf32, #tpu.memory_space<vmem>>, vector<16x4xf32>
    %cst_20 = arith.constant dense<0.000000e+00> : vector<8x4xf32>
    %23 = tpu.matmul %21, %22, %cst_20 {dimension_numbers = #tpu.dot_dimension_numbers<[1], [0], [0], [1], [0, 0, 1, 1], [], []>} : vector<8x16xf32>, vector<16x4xf32>, vector<8x4xf32> -> vector<8x4xf32>
    %c0_21 = arith.constant 0 : index
    %c0_22 = arith.constant 0 : index
    %24 = vector.load %arg9[%c0_21, %c0_22] : memref<1x4xf32, #tpu.memory_space<vmem>>, vector<1x4xf32>
    %25 = vector.broadcast %24 : vector<1x4xf32> to vector<8x4xf32>
    %26 = arith.addf %23, %25 : vector<8x4xf32>
    %c0_23 = arith.constant 0 : index
    %c0_24 = arith.constant 0 : index
    %27 = vector.load %arg10[%c0_23, %c0_24] : memref<8x4xf32, #tpu.memory_space<vmem>>, vector<8x4xf32>
    tpu.vector_store %arg10[%c0_23, %c0_24], %26 {strides = array<i32>} : memref<8x4xf32, #tpu.memory_space<vmem>>, vector<8x4xf32>,
    return
  }
  func.func @transform_0(%arg0: i32) -> (i32, i32) {
    %c0_i32 = arith.constant 0 : i32
    %c0_i32_0 = arith.constant 0 : i32
    return %arg0, %c0_i32 : i32, i32
  }
  func.func @transform_1(%arg0: i32) -> (i32, i32) {
    %c0_i32 = arith.constant 0 : i32
    %c0_i32_0 = arith.constant 0 : i32
    %c0_i32_1 = arith.constant 0 : i32
    return %c0_i32, %c0_i32_0 : i32, i32
  }
  func.func @transform_2(%arg0: i32) -> (i32, i32) {
    %c0_i32 = arith.constant 0 : i32
    %c0_i32_0 = arith.constant 0 : i32
    %c0_i32_1 = arith.constant 0 : i32
    return %c0_i32, %c0_i32_0 : i32, i32
  }
  func.func @transform_3(%arg0: i32) -> (i32, i32) {
    %c0_i32 = arith.constant 0 : i32
    %c0_i32_0 = arith.constant 0 : i32
    %c0_i32_1 = arith.constant 0 : i32
    return %c0_i32, %c0_i32_0 : i32, i32
  }
  func.func @transform_4(%arg0: i32) -> (i32, i32) {
    %c0_i32 = arith.constant 0 : i32
    %c0_i32_0 = arith.constant 0 : i32
    %c0_i32_1 = arith.constant 0 : i32
    return %c0_i32, %c0_i32_0 : i32, i32
  }
  func.func @transform_5(%arg0: i32) -> (i32, i32) {
    %c0_i32 = arith.constant 0 : i32
    %c0_i32_0 = arith.constant 0 : i32
    %c0_i32_1 = arith.constant 0 : i32
    return %c0_i32, %c0_i32_0 : i32, i32
  }
  func.func @transform_6(%arg0: i32) -> (i32, i32) {
    %c0_i32 = arith.constant 0 : i32
    %c0_i32_0 = arith.constant 0 : i32
    %c0_i32_1 = arith.constant 0 : i32
    return %c0_i32, %c0_i32_0 : i32, i32
  }
  func.func @transform_7(%arg0: i32) -> (i32, i32) {
    %c0_i32 = arith.constant 0 : i32
    %c0_i32_0 = arith.constant 0 : i32
    %c0_i32_1 = arith.constant 0 : i32
    return %c0_i32, %c0_i32_0 : i32, i32
  }
  func.func @transform_8(%arg0: i32) -> (i32, i32) {
    %c0_i32 = arith.constant 0 : i32
    %c0_i32_0 = arith.constant 0 : i32
    %c0_i32_1 = arith.constant 0 : i32
    return %c0_i32, %c0_i32_0 : i32, i32
  }
  func.func @transform_9(%arg0: i32) -> (i32, i32) {
    %c0_i32 = arith.constant 0 : i32
    %c0_i32_0 = arith.constant 0 : i32
    return %arg0, %c0_i32 : i32, i32
  }
}

</mosaic_0001>

<llo_original>
// kernel: tpu_custom_call.1
$region0: #{tpu_custom_call.1}
  #allocation0 [shape = 'u32[]', space=smem, size = 0x4, offset = 0x4, fixed_abs, tag = 'smem constant byte address 0x4 - core index']
  #allocation1 [shape = 'u32[144,128]{1,0:T(1,128)}', space=vmem, size = 0x12000, scoped, tag = 'internal scratch']
  %s0 = inlined_call_operand.vmem [shape: f32[8,8], index: 0, kind: input, shape index: {}]
  %s1 = inlined_call_operand.vmem [shape: f32[8,32], index: 1, kind: input, shape index: {}]
  %s2 = inlined_call_operand.vmem [shape: f32[1,32], index: 2, kind: input, shape index: {}]
  %s3 = inlined_call_operand.vmem [shape: f32[32,32], index: 3, kind: input, shape index: {}]
  %s4 = inlined_call_operand.vmem [shape: f32[1,32], index: 4, kind: input, shape index: {}]
  %s5 = inlined_call_operand.vmem [shape: f32[32,16], index: 5, kind: input, shape index: {}]
  %s6 = inlined_call_operand.vmem [shape: f32[1,16], index: 6, kind: input, shape index: {}]
  %s7 = inlined_call_operand.vmem [shape: f32[16,4], index: 7, kind: input, shape index: {}]
  %s8 = inlined_call_operand.vmem [shape: f32[1,4], index: 8, kind: input, shape index: {}]
  %s9 = inlined_call_operand.vmem [shape: f32[8,4], index: 9, kind: output, shape index: {}]
  %s10 = sld [smem:[#allocation0]]
  $region46: #{tpu_custom_call.1} parent=0
    _
  %s12 = ssub.s32 1, %s10
  %s13 = scalar_select 0, %s12, %s10
  // Predicated region
  $region2: #{tpu_custom_call.1} parent=0 // pred_check
    _
  $region3: #{tpu_custom_call.1} parent=0 // pred_check_branch
    %15 = sbr.rel (0) target = $region5
  $region4: #{tpu_custom_call.1} parent=0 // pred_region
    _
  $region5: #{tpu_custom_call.1} parent=0 // pred_fallthru
    _
  // Predicated region
  $region6: #{tpu_custom_call.1} parent=0 // pred_check
    _
  $region7: #{tpu_custom_call.1} parent=0 // pred_check_branch
    %17 = sbr.rel (0) target = $region9
  $region8: #{tpu_custom_call.1} parent=0 // pred_region
    _
  $region9: #{tpu_custom_call.1} parent=0 // pred_fallthru
    _
  // Predicated region
  $region10: #{tpu_custom_call.1} parent=0 // pred_check
    _
  $region11: #{tpu_custom_call.1} parent=0 // pred_check_branch
    %19 = sbr.rel (0) target = $region13
  $region12: #{tpu_custom_call.1} parent=0 // pred_region
    _
  $region13: #{tpu_custom_call.1} parent=0 // pred_fallthru
    _
  // Predicated region
  $region14: #{tpu_custom_call.1} parent=0 // pred_check
    _
  $region15: #{tpu_custom_call.1} parent=0 // pred_check_branch
    %21 = sbr.rel (0) target = $region17
  $region16: #{tpu_custom_call.1} parent=0 // pred_region
    _
  $region17: #{tpu_custom_call.1} parent=0 // pred_fallthru
    _
  // Predicated region
  $region18: #{tpu_custom_call.1} parent=0 // pred_check
    _
  $region19: #{tpu_custom_call.1} parent=0 // pred_check_branch
    %23 = sbr.rel (0) target = $region21
  $region20: #{tpu_custom_call.1} parent=0 // pred_region
    _
  $region21: #{tpu_custom_call.1} parent=0 // pred_fallthru
    _
  // Predicated region
  $region22: #{tpu_custom_call.1} parent=0 // pred_check
    _
  $region23: #{tpu_custom_call.1} parent=0 // pred_check_branch
    %25 = sbr.rel (0) target = $region25
  $region24: #{tpu_custom_call.1} parent=0 // pred_region
    _
  $region25: #{tpu_custom_call.1} parent=0 // pred_fallthru
    _
  // Predicated region
  $region26: #{tpu_custom_call.1} parent=0 // pred_check
    _
  $region27: #{tpu_custom_call.1} parent=0 // pred_check_branch
    %27 = sbr.rel (0) target = $region29
  $region28: #{tpu_custom_call.1} parent=0 // pred_region
    _
  $region29: #{tpu_custom_call.1} parent=0 // pred_fallthru
    _
  // Predicated region
  $region30: #{tpu_custom_call.1} parent=0 // pred_check
    _
  $region31: #{tpu_custom_call.1} parent=0 // pred_check_branch
    %29 = sbr.rel (0) target = $region33
  $region32: #{tpu_custom_call.1} parent=0 // pred_region
    _
  $region33: #{tpu_custom_call.1} parent=0 // pred_fallthru
    _
  // Predicated region
  $region34: #{tpu_custom_call.1} parent=0 // pred_check
    _
  $region35: #{tpu_custom_call.1} parent=0 // pred_check_branch
    %31 = sbr.rel (0) target = $region37
  $region36: #{tpu_custom_call.1} parent=0 // pred_region
    _
  $region37: #{tpu_custom_call.1} parent=0 // pred_fallthru
    _
  %v32 = vld [vmem:[%s0] sm:$0xff]
  %v33 = vld [vmem:[%s1] sm:$0xff]
  %v34 = vld [vmem:[%s2] sm:$0x1]
  %v36 = vlaneseq
  %v37 = vshrl.u32 %v36, 7
  %v38 = vsub.s32 0, %v37
  %v39 = vrot.slane %v34, %v38
  %vm41 = vcmask 64512
  %v43 = vsel %vm41, %v32, 0
  %45 = vmatprep.subr.mxu0 0.0
  %46 = vmatpush1.msra.mxu0 0.0
  %47 = vmatprep.subr.mxu0 0.0
  %48 = vmatpush1.msra.mxu0 0.0
  %49 = vmatprep.subr.mxu0 0.0
  %50 = vmatpush1.msra.mxu0 0.0
  %51 = vmatprep.subr.mxu0 0.0
  %52 = vmatpush1.msra.mxu0 0.0
  %53 = vmatprep.subr.mxu0 0.0
  %54 = vmatpush1.msra.mxu0 0.0
  %55 = vmatprep.subr.mxu0 0.0
  %56 = vmatpush1.msra.mxu0 0.0
  %57 = vmatprep.subr.mxu0 0.0
  %58 = vmatpush1.msra.mxu0 0.0
  %59 = vmatprep.subr.mxu0 0.0
  %60 = vmatpush1.msra.mxu0 0.0
  %61 = vmatprep.subr.mxu0 0.0
  %62 = vmatpush1.msra.mxu0 0.0
  %63 = vmatprep.subr.mxu0 0.0
  %64 = vmatpush1.msra.mxu0 0.0
  %65 = vmatprep.subr.mxu0 0.0
  %66 = vmatpush1.msra.mxu0 0.0
  %67 = vmatprep.subr.mxu0 0.0
  %68 = vmatpush1.msra.mxu0 0.0
  %69 = vmatprep.subr.mxu0 0.0
  %70 = vmatpush1.msra.mxu0 0.0
  %71 = vmatprep.subr.mxu0 0.0
  %72 = vmatpush1.msra.mxu0 0.0
  %73 = vmatprep.subr.mxu0 0.0
  %74 = vmatpush1.msra.mxu0 0.0
  %75 = vmatprep.subr.mxu0 0.0
  %76 = vmatpush1.msra.mxu0 %v33
  %77 = vmatprep.subr.mxu0 0.0
  %78 = vmatpush2.msra.mxu0 0.0
  %79 = vmatprep.subr.mxu0 0.0
  %80 = vmatpush2.msra.mxu0 0.0
  %81 = vmatprep.subr.mxu0 0.0
  %82 = vmatpush2.msra.mxu0 0.0
  %83 = vmatprep.subr.mxu0 0.0
  %84 = vmatpush2.msra.mxu0 0.0
  %85 = vmatprep.subr.mxu0 0.0
  %86 = vmatpush2.msra.mxu0 0.0
  %87 = vmatprep.subr.mxu0 0.0
  %88 = vmatpush2.msra.mxu0 0.0
  %89 = vmatprep.subr.mxu0 0.0
  %90 = vmatpush2.msra.mxu0 0.0
  %91 = vmatprep.subr.mxu0 0.0
  %92 = vmatpush2.msra.mxu0 0.0
  %93 = vmatprep.subr.mxu0 0.0
  %94 = vmatpush2.msra.mxu0 0.0
  %95 = vmatprep.subr.mxu0 0.0
  %96 = vmatpush2.msra.mxu0 0.0
  %97 = vmatprep.subr.mxu0 0.0
  %98 = vmatpush2.msra.mxu0 0.0
  %99 = vmatprep.subr.mxu0 0.0
  %100 = vmatpush2.msra.mxu0 0.0
  %101 = vmatprep.subr.mxu0 0.0
  %102 = vmatpush2.msra.mxu0 0.0
  %103 = vmatprep.subr.mxu0 0.0
  %104 = vmatpush2.msra.mxu0 0.0
  %105 = vmatprep.subr.mxu0 0.0
  %106 = vmatpush2.msra.mxu0 0.0
  %107 = vmatprep.subr.mxu0 0.0
  %108 = vmatpush2.msra.mxu0 0.0
  %109 = vmatprep.mubr.f32.mxu0 0.0
  %110 = vmatmul.mubr.f32.gmra.mxu0 %v43
  %v111 = vpop.f32.mrf.mxu0
  %v112 = vadd.f32 %v39, %v111
  %v113 = vpop.f32.mrf.mxu0
  %114 = vdwg.mxu0
  %v115 = vmax.f32 %v112, 0.0
  %v116 = vld [vmem:[%s3] sm:$0xff]
  %v117 = vld [vmem:[%s3 + $0x8] sm:$0xff]
  %v118 = vld [vmem:[%s3 + $0x10] sm:$0xff]
  %v119 = vld [vmem:[%s3 + $0x18] sm:$0xff]
  %v120 = vld [vmem:[%s4] sm:$0x1]
  %v122 = vlaneseq
  %v123 = vshrl.u32 %v122, 7
  %v124 = vsub.s32 0, %v123
  %v125 = vrot.slane %v120, %v124
  %vm127 = vcmask 261120
  %v129 = vsel %vm127, %v115, 0
  %131 = vmatprep.subr.mxu0 0.0
  %132 = vmatpush1.msra.mxu0 0.0
  %133 = vmatprep.subr.mxu0 0.0
  %134 = vmatpush1.msra.mxu0 0.0
  %135 = vmatprep.subr.mxu0 0.0
  %136 = vmatpush1.msra.mxu0 0.0
  %137 = vmatprep.subr.mxu0 0.0
  %138 = vmatpush1.msra.mxu0 0.0
  %139 = vmatprep.subr.mxu0 0.0
  %140 = vmatpush1.msra.mxu0 0.0
  %141 = vmatprep.subr.mxu0 0.0
  %142 = vmatpush1.msra.mxu0 0.0
  %143 = vmatprep.subr.mxu0 0.0
  %144 = vmatpush1.msra.mxu0 0.0
  %145 = vmatprep.subr.mxu0 0.0
  %146 = vmatpush1.msra.mxu0 0.0
  %147 = vmatprep.subr.mxu0 0.0
  %148 = vmatpush1.msra.mxu0 0.0
  %149 = vmatprep.subr.mxu0 0.0
  %150 = vmatpush1.msra.mxu0 0.0
  %151 = vmatprep.subr.mxu0 0.0
  %152 = vmatpush1.msra.mxu0 0.0
  %153 = vmatprep.subr.mxu0 0.0
  %154 = vmatpush1.msra.mxu0 0.0
  %155 = vmatprep.subr.mxu0 0.0
  %156 = vmatpush1.msra.mxu0 %v119
  %157 = vmatprep.subr.mxu0 0.0
  %158 = vmatpush1.msra.mxu0 %v118
  %159 = vmatprep.subr.mxu0 0.0
  %160 = vmatpush1.msra.mxu0 %v117
  %161 = vmatprep.subr.mxu0 0.0
  %162 = vmatpush1.msra.mxu0 %v116
  %163 = vmatprep.subr.mxu0 0.0
  %164 = vmatpush2.msra.mxu0 0.0
  %165 = vmatprep.subr.mxu0 0.0
  %166 = vmatpush2.msra.mxu0 0.0
  %167 = vmatprep.subr.mxu0 0.0
  %168 = vmatpush2.msra.mxu0 0.0
  %169 = vmatprep.subr.mxu0 0.0
  %170 = vmatpush2.msra.mxu0 0.0
  %171 = vmatprep.subr.mxu0 0.0
  %172 = vmatpush2.msra.mxu0 0.0
  %173 = vmatprep.subr.mxu0 0.0
  %174 = vmatpush2.msra.mxu0 0.0
  %175 = vmatprep.subr.mxu0 0.0
  %176 = vmatpush2.msra.mxu0 0.0
  %177 = vmatprep.subr.mxu0 0.0
  %178 = vmatpush2.msra.mxu0 0.0
  %179 = vmatprep.subr.mxu0 0.0
  %180 = vmatpush2.msra.mxu0 0.0
  %181 = vmatprep.subr.mxu0 0.0
  %182 = vmatpush2.msra.mxu0 0.0
  %183 = vmatprep.subr.mxu0 0.0
  %184 = vmatpush2.msra.mxu0 0.0
  %185 = vmatprep.subr.mxu0 0.0
  %186 = vmatpush2.msra.mxu0 0.0
  %187 = vmatprep.subr.mxu0 0.0
  %188 = vmatpush2.msra.mxu0 0.0
  %189 = vmatprep.subr.mxu0 0.0
  %190 = vmatpush2.msra.mxu0 0.0
  %191 = vmatprep.subr.mxu0 0.0
  %192 = vmatpush2.msra.mxu0 0.0
  %193 = vmatprep.subr.mxu0 0.0
  %194 = vmatpush2.msra.mxu0 0.0
  %195 = vmatprep.mubr.f32.mxu0 0.0
  %196 = vmatmul.mubr.f32.gmra.mxu0 %v129
  %v197 = vpop.f32.mrf.mxu0
  %v198 = vadd.f32 %v125, %v197
  %v199 = vpop.f32.mrf.mxu0
  %200 = vdwg.mxu0
  %v201 = vmax.f32 %v198, 0.0
  %v202 = vld [vmem:[%s5] sm:$0xff]
  %v203 = vld [vmem:[%s5 + $0x8] sm:$0xff]
  %v204 = vld [vmem:[%s5 + $0x10] sm:$0xff]
  %v205 = vld [vmem:[%s5 + $0x18] sm:$0xff]
  %v206 = vld [vmem:[%s6] sm:$0x1]
  %v208 = vlaneseq
  %v209 = vshrl.u32 %v208, 7
  %v210 = vsub.s32 0, %v209
  %v211 = vrot.slane %v206, %v210
  %v214 = vsel %vm127, %v201, 0
  %216 = vmatprep.subr.mxu0 0.0
  %217 = vmatpush1.msra.mxu0 0.0
  %218 = vmatprep.subr.mxu0 0.0
  %219 = vmatpush1.msra.mxu0 0.0
  %220 = vmatprep.subr.mxu0 0.0
  %221 = vmatpush1.msra.mxu0 0.0
  %222 = vmatprep.subr.mxu0 0.0
  %223 = vmatpush1.msra.mxu0 0.0
  %224 = vmatprep.subr.mxu0 0.0
  %225 = vmatpush1.msra.mxu0 0.0
  %226 = vmatprep.subr.mxu0 0.0
  %227 = vmatpush1.msra.mxu0 0.0
  %228 = vmatprep.subr.mxu0 0.0
  %229 = vmatpush1.msra.mxu0 0.0
  %230 = vmatprep.subr.mxu0 0.0
  %231 = vmatpush1.msra.mxu0 0.0
  %232 = vmatprep.subr.mxu0 0.0
  %233 = vmatpush1.msra.mxu0 0.0
  %234 = vmatprep.subr.mxu0 0.0
  %235 = vmatpush1.msra.mxu0 0.0
  %236 = vmatprep.subr.mxu0 0.0
  %237 = vmatpush1.msra.mxu0 0.0
  %238 = vmatprep.subr.mxu0 0.0
  %239 = vmatpush1.msra.mxu0 0.0
  %240 = vmatprep.subr.mxu0 0.0
  %241 = vmatpush1.msra.mxu0 %v205
  %242 = vmatprep.subr.mxu0 0.0
  %243 = vmatpush1.msra.mxu0 %v204
  %244 = vmatprep.subr.mxu0 0.0
  %245 = vmatpush1.msra.mxu0 %v203
  %246 = vmatprep.subr.mxu0 0.0
  %247 = vmatpush1.msra.mxu0 %v202
  %248 = vmatprep.subr.mxu0 0.0
  %249 = vmatpush2.msra.mxu0 0.0
  %250 = vmatprep.subr.mxu0 0.0
  %251 = vmatpush2.msra.mxu0 0.0
  %252 = vmatprep.subr.mxu0 0.0
  %253 = vmatpush2.msra.mxu0 0.0
  %254 = vmatprep.subr.mxu0 0.0
  %255 = vmatpush2.msra.mxu0 0.0
  %256 = vmatprep.subr.mxu0 0.0
  %257 = vmatpush2.msra.mxu0 0.0
  %258 = vmatprep.subr.mxu0 0.0
  %259 = vmatpush2.msra.mxu0 0.0
  %260 = vmatprep.subr.mxu0 0.0
  %261 = vmatpush2.msra.mxu0 0.0
  %262 = vmatprep.subr.mxu0 0.0
  %263 = vmatpush2.msra.mxu0 0.0
  %264 = vmatprep.subr.mxu0 0.0
  %265 = vmatpush2.msra.mxu0 0.0
  %266 = vmatprep.subr.mxu0 0.0
  %267 = vmatpush2.msra.mxu0 0.0
  %268 = vmatprep.subr.mxu0 0.0
  %269 = vmatpush2.msra.mxu0 0.0
  %270 = vmatprep.subr.mxu0 0.0
  %271 = vmatpush2.msra.mxu0 0.0
  %272 = vmatprep.subr.mxu0 0.0
  %273 = vmatpush2.msra.mxu0 0.0
  %274 = vmatprep.subr.mxu0 0.0
  %275 = vmatpush2.msra.mxu0 0.0
  %276 = vmatprep.subr.mxu0 0.0
  %277 = vmatpush2.msra.mxu0 0.0
  %278 = vmatprep.subr.mxu0 0.0
  %279 = vmatpush2.msra.mxu0 0.0
  %280 = vmatprep.mubr.f32.mxu0 0.0
  %281 = vmatmul.mubr.f32.gmra.mxu0 %v214
  %v282 = vpop.f32.mrf.mxu0
  %v283 = vadd.f32 %v211, %v282
  %v284 = vpop.f32.mrf.mxu0
  %285 = vdwg.mxu0
  %v286 = vmax.f32 %v283, 0.0
  %v287 = vld [vmem:[%s7] sm:$0xff]
  %v288 = vld [vmem:[%s7 + $0x8] sm:$0xff]
  %v289 = vld [vmem:[%s8] sm:$0x1]
  %v291 = vlaneseq
  %v292 = vshrl.u32 %v291, 7
  %v293 = vsub.s32 0, %v292
  %v294 = vrot.slane %v289, %v293
  %vm296 = vcmask 130048
  %v298 = vsel %vm296, %v286, 0
  %300 = vmatprep.subr.mxu0 0.0
  %301 = vmatpush1.msra.mxu0 0.0
  %302 = vmatprep.subr.mxu0 0.0
  %303 = vmatpush1.msra.mxu0 0.0
  %304 = vmatprep.subr.mxu0 0.0
  %305 = vmatpush1.msra.mxu0 0.0
  %306 = vmatprep.subr.mxu0 0.0
  %307 = vmatpush1.msra.mxu0 0.0
  %308 = vmatprep.subr.mxu0 0.0
  %309 = vmatpush1.msra.mxu0 0.0
  %310 = vmatprep.subr.mxu0 0.0
  %311 = vmatpush1.msra.mxu0 0.0
  %312 = vmatprep.subr.mxu0 0.0
  %313 = vmatpush1.msra.mxu0 0.0
  %314 = vmatprep.subr.mxu0 0.0
  %315 = vmatpush1.msra.mxu0 0.0
  %316 = vmatprep.subr.mxu0 0.0
  %317 = vmatpush1.msra.mxu0 0.0
  %318 = vmatprep.subr.mxu0 0.0
  %319 = vmatpush1.msra.mxu0 0.0
  %320 = vmatprep.subr.mxu0 0.0
  %321 = vmatpush1.msra.mxu0 0.0
  %322 = vmatprep.subr.mxu0 0.0
  %323 = vmatpush1.msra.mxu0 0.0
  %324 = vmatprep.subr.mxu0 0.0
  %325 = vmatpush1.msra.mxu0 0.0
  %326 = vmatprep.subr.mxu0 0.0
  %327 = vmatpush1.msra.mxu0 0.0
  %328 = vmatprep.subr.mxu0 0.0
  %329 = vmatpush1.msra.mxu0 %v288
  %330 = vmatprep.subr.mxu0 0.0
  %331 = vmatpush1.msra.mxu0 %v287
  %332 = vmatprep.subr.mxu0 0.0
  %333 = vmatpush2.msra.mxu0 0.0
  %334 = vmatprep.subr.mxu0 0.0
  %335 = vmatpush2.msra.mxu0 0.0
  %336 = vmatprep.subr.mxu0 0.0
  %337 = vmatpush2.msra.mxu0 0.0
  %338 = vmatprep.subr.mxu0 0.0
  %339 = vmatpush2.msra.mxu0 0.0
  %340 = vmatprep.subr.mxu0 0.0
  %341 = vmatpush2.msra.mxu0 0.0
  %342 = vmatprep.subr.mxu0 0.0
  %343 = vmatpush2.msra.mxu0 0.0
  %344 = vmatprep.subr.mxu0 0.0
  %345 = vmatpush2.msra.mxu0 0.0
  %346 = vmatprep.subr.mxu0 0.0
  %347 = vmatpush2.msra.mxu0 0.0
  %348 = vmatprep.subr.mxu0 0.0
  %349 = vmatpush2.msra.mxu0 0.0
  %350 = vmatprep.subr.mxu0 0.0
  %351 = vmatpush2.msra.mxu0 0.0
  %352 = vmatprep.subr.mxu0 0.0
  %353 = vmatpush2.msra.mxu0 0.0
  %354 = vmatprep.subr.mxu0 0.0
  %355 = vmatpush2.msra.mxu0 0.0
  %356 = vmatprep.subr.mxu0 0.0
  %357 = vmatpush2.msra.mxu0 0.0
  %358 = vmatprep.subr.mxu0 0.0
  %359 = vmatpush2.msra.mxu0 0.0
  %360 = vmatprep.subr.mxu0 0.0
  %361 = vmatpush2.msra.mxu0 0.0
  %362 = vmatprep.subr.mxu0 0.0
  %363 = vmatpush2.msra.mxu0 0.0
  %364 = vmatprep.mubr.f32.mxu0 0.0
  %365 = vmatmul.mubr.f32.gmra.mxu0 %v298
  %v366 = vpop.f32.mrf.mxu0
  %v367 = vadd.f32 %v294, %v366
  %v368 = vpop.f32.mrf.mxu0
  %369 = vdwg.mxu0
  %vm370 = vcmask 31744
  %371 = vst.msk [vmem:[%s9] sm:$0xff] %vm370, %v367
  // Predicated region
  $region38: #{tpu_custom_call.1} parent=0 // pred_check
    _
  $region39: #{tpu_custom_call.1} parent=0 // pred_check_branch
    %373 = sbr.rel (0) target = $region41
  $region40: #{tpu_custom_call.1} parent=0 // pred_region
    _
  $region41: #{tpu_custom_call.1} parent=0 // pred_fallthru
    _
  // Predicated region
  $region42: #{tpu_custom_call.1} parent=0 // pred_check
    _
  $region43: #{tpu_custom_call.1} parent=0 // pred_check_branch
    %375 = sbr.rel (0) target = $region45
  $region44: #{tpu_custom_call.1} parent=0 // pred_region
    _
  $region45: #{tpu_custom_call.1} parent=0 // pred_fallthru
    _

</llo_original>
